<compile_context>
chip_gen: v7x
topology: tpu7x:2x2x1
jax: 0.10.0
libtpu: 0.0.40
codegen_flags: <defaults>
</compile_context>

<pallas_src>
import math
import warnings

import jax
import jax.numpy as jnp
from jax.experimental import pallas as pl
from jax.experimental.pallas import tpu as pltpu


_LANES = 512                # lane-dense slab width (multiple of 128)
_TILE_ROWS_CAP = 1024       # f32 elementwise HBM roofline plateaus ~512-1024 rows
_MAX_INPUTS_PER_CALL = 8    # keeps 2*(n+1) double-buffered tiles inside 64 MiB VMEM


def _round_up(a, b):
    return ((a + b - 1) // b) * b


def _vmem_capacity_bytes():
    """Best-effort query of physical VMEM; falls back to the smallest (v7x)."""
    try:
        return int(pltpu.get_tpu_info().vmem_capacity_bytes)
    except Exception:  # pragma: no cover - environment dependent
        warnings.warn(
            "pltpu.get_tpu_info() unavailable; assuming 64 MiB VMEM (v7x) for "
            "tile sizing", RuntimeWarning)
        return 64 * 1024 * 1024


def _mix_kernel(w_ref, *refs):
    """out = sum_i w_ref[i] * in_i, accumulated in f32.

    w_ref: (n,) f32 in SMEM (dynamic weights, scalar reads).
    refs:  n input VMEM tiles followed by the output VMEM tile.
    """
    n = len(refs) - 1
    out_ref = refs[n]
    acc = refs[0][...].astype(jnp.float32) * w_ref[0]
    for i in range(1, n):
        acc = acc + refs[i][...].astype(jnp.float32) * w_ref[i]
    out_ref[...] = acc.astype(out_ref.dtype)


def _mix_2d(slabs, weights, out_dtype):
    """One pallas_call: weighted sum of same-shape 2-D slabs."""
    n = len(slabs)
    rows, lanes = (int(d) for d in slabs[0].shape)

    vmem_cap = _vmem_capacity_bytes()
    budget = min(vmem_cap // 2, 48 << 20)

    # Sublane packing granularity of the narrowest dtype present
    # (f32 -> 8 rows, bf16 -> 16, int8/fp8 -> 32).
    min_isz = min([jnp.dtype(s.dtype).itemsize for s in slabs]
                  + [jnp.dtype(out_dtype).itemsize])
    sub = 8 * max(1, 4 // int(min_isz))

    # Tile rows: fit 2*(n+1) double-buffered f32-sized tiles in the budget,
    # cap at the roofline plateau, and keep <= ceil(rows/2) so the grid can
    # split across two TensorCores (v7x).
    per_buf = max(budget // (2 * (n + 1)), sub * lanes * 4)
    tile = min(_TILE_ROWS_CAP, per_buf // (lanes * 4))
    tile = min(tile, _round_up(pl.cdiv(rows, 2), sub))
    tile = max((tile // sub) * sub, sub)
    if tile >= rows:
        tile = rows                      # single full block along rows
    grid_len = pl.cdiv(rows, tile)       # partial last block: Pallas masks it

    tile_bytes = tile * lanes * 4        # f32 worst case per buffer
    need_bytes = 2 * (n + 1) * tile_bytes
    vmem_limit = int(min(max(need_bytes + (8 << 20), 32 << 20),
                         int(vmem_cap * 0.9)))

    bytes_accessed = sum(s.size * jnp.dtype(s.dtype).itemsize for s in slabs)
    bytes_accessed += rows * lanes * jnp.dtype(out_dtype).itemsize
    cost = pl.CostEstimate(flops=2 * n * rows * lanes, transcendentals=0,
                           bytes_accessed=int(bytes_accessed))

    block = pl.BlockSpec((tile, lanes), lambda i: (i, 0))
    w_spec = pl.BlockSpec(memory_space=pltpu.MemorySpace.SMEM)

    # NOTE: input_output_aliases={1: 0} would drop one output-sized HBM
    # allocation when dtypes match, but risks donating a buffer the caller's
    # sub-model output still references in eager mode; intentionally omitted.
    return pl.pallas_call(
        _mix_kernel,
        out_shape=jax.ShapeDtypeStruct((rows, lanes), out_dtype),
        grid=(grid_len,),
        in_specs=[w_spec] + [block] * n,
        out_specs=block,
        compiler_params=pltpu.CompilerParams(
            dimension_semantics=("parallel",),
            vmem_limit_bytes=vmem_limit,
        ),
        cost_estimate=cost,
    )(weights, *slabs)


def _mix_shaped(logits_list, weights, out_dtype):
    """Pick a pad-free 2-D layout, run the kernel, reshape back."""
    n = len(logits_list)
    shape = logits_list[0].shape
    num_el = math.prod(shape) if len(shape) else 1

    vmem_cap = _vmem_capacity_bytes()
    budget = min(vmem_cap // 2, 48 << 20)

    # Layout selection (all free reshapes of contiguous arrays; no HBM copy):
    if num_el % _LANES == 0:
        rows, lanes = num_el // _LANES, _LANES            # lane-dense slab
    elif len(shape) >= 2:
        lanes = int(shape[-1])
        rows = num_el // lanes                            # keep trailing dim
    else:
        rows, lanes = 1, num_el

    # Rare fallback: trailing dim so large that even 8-row tiles of every
    # buffer blow the VMEM budget -> pad the flat vector to a 512-lane slab.
    if num_el % _LANES != 0 and 2 * (n + 1) * 8 * lanes * 4 > budget:
        pad = _round_up(num_el, _LANES) - num_el
        slabs = [jnp.pad(l.reshape(-1), (0, pad)).reshape(-1, _LANES)
                 for l in logits_list]
        mixed = _mix_2d(slabs, weights, out_dtype)
        return mixed.reshape(-1)[:num_el].reshape(shape)

    slabs = [l.reshape(rows, lanes) for l in logits_list]
    mixed = _mix_2d(slabs, weights, out_dtype)
    return mixed.reshape(shape)


def _weighted_mix(logits_list, weights, out_dtype=None):
    """Pallas weighted sum of a list of same-shape logits tensors.

    `weights` is a (n,) array (traced; no recompilation on value change).
    """
    n = len(logits_list)
    assert n >= 1
    shape = logits_list[0].shape
    for l in logits_list:
        assert l.shape == shape, "all sub-model logits must share a shape"
    weights = jnp.asarray(weights, jnp.float32)
    if out_dtype is None:
        out_dtype = jnp.result_type(*(l.dtype for l in logits_list))

    # Chunk over models when n is large: keeps per-call VMEM residency bounded
    # so tile_rows stays at the roofline plateau (critical on v7x's 64 MiB).
    if n > _MAX_INPUTS_PER_CALL:
        partials = []
        for s in range(0, n, _MAX_INPUTS_PER_CALL):
            partials.append(
                _weighted_mix(logits_list[s:s + _MAX_INPUTS_PER_CALL],
                              weights[s:s + _MAX_INPUTS_PER_CALL],
                              jnp.float32))
        ones = jnp.ones((len(partials),), jnp.float32)
        return _weighted_mix(partials, ones, out_dtype)

    return _mix_shaped(logits_list, weights, out_dtype)


class MixtureModelPallas:
    """Pallas equivalent of MixtureModel: weighted mixture of model logits."""

    def __init__(self, models, weights):
        assert len(models) == len(weights)
        self.models = list(models)
        self.weights = jnp.asarray([float(w) for w in weights], jnp.float32)

    def __call__(self, images, image_lengths):
        logits_list = []
        logits_lengths = None
        for model in self.models:
            logits, logits_lengths = model(images, image_lengths)
            logits_list.append(logits)
        logits_mix = _weighted_mix(logits_list, self.weights)
        return logits_mix, logits_lengths


if __name__ == "__main__":
    key = jax.random.PRNGKey(0)
    B, C_IN, H, W, C_OUT = 2, 1, 16, 16, 32
    k1, k2, k3, kx, kc = jax.random.split(key, 5)

    def make_model(k):
        # Stand-in sub-model (the real ones are arbitrary nn.Modules):
        # images (B, 1, H, W) -> logits (B, T=H, C_OUT), lengths pass-through.
        kw, kb = jax.random.split(k)
        w_m = jax.random.normal(kw, (W, C_OUT), jnp.float32) * 0.1
        b_m = jax.random.normal(kb, (C_OUT,), jnp.float32) * 0.1

        def model(images, image_lengths):
            feats = jnp.squeeze(images, axis=1)          # (B, H, W)
            logits = jnp.tanh(feats @ w_m + b_m)         # (B, H, C_OUT)
            return logits, image_lengths

        return model

    models = [make_model(k1), make_model(k2), make_model(k3)]
    weights = [0.5, 0.3, 0.2]

    images = jax.random.normal(kx, (B, C_IN, H, W), dtype=jnp.float32)
    image_lengths = jnp.full((B,), W, dtype=jnp.int32)

    # --- main path: 3 models, num_el % 512 == 0 (lane-dense slab, no pad) ---
    mixture = MixtureModelPallas(models, weights)
    logits_mix, logits_lengths = mixture(images, image_lengths)
    logits_mix = jax.block_until_ready(logits_mix)

    ref_mix = None
    ref_lengths = None
    for m, w in zip(models, weights):
        lg, ref_lengths = m(images, image_lengths)
        ref_mix = lg * w if ref_mix is None else ref_mix + lg * w

    assert logits_mix.shape == ref_mix.shape and logits_mix.dtype == ref_mix.dtype
    assert jnp.allclose(logits_mix, ref_mix, atol=1e-5, rtol=1e-5)
    assert jnp.array_equal(logits_lengths, ref_lengths)

    # --- secondary path: many models (chunking) + non-512 trailing dim -------
    n_big = 10
    keys = jax.random.split(kc, n_big)
    big_logits = [jax.random.normal(k, (4, 24, 40), jnp.float32) for k in keys]
    big_weights = [float(i + 1) / 10.0 for i in range(n_big)]
    mixed_big = _weighted_mix(big_logits, jnp.asarray(big_weights, jnp.float32))
    mixed_big = jax.block_until_ready(mixed_big)
    ref_big = sum(w * x for w, x in zip(big_weights, big_logits))
    assert mixed_big.shape == ref_big.shape
    assert jnp.allclose(mixed_big, ref_big, atol=1e-4, rtol=1e-5)

    print("KERNEL_OK")
</pallas_src>

<mosaic_0001>
module attributes {stable_mosaic.version = 11 : i64} {
  func.func @_mix_kernel(%arg0: i32, %arg1: memref<3xf32, #tpu.memory_space<smem>>, %arg2: memref<2x512xf32, #tpu.memory_space<vmem>>, %arg3: memref<2x512xf32, #tpu.memory_space<vmem>>, %arg4: memref<2x512xf32, #tpu.memory_space<vmem>>, %arg5: memref<2x512xf32, #tpu.memory_space<vmem>>) attributes {dimension_semantics = [#tpu.dimension_semantics<parallel>], iteration_bounds = array<i64: 1>, scalar_prefetch = 0 : i64, scratch_operands = 0 : i64, tpu.core_type = #tpu.core_type<tc>, window_params = [{transform_indices = @transform_0, window_bounds = array<i64: 3>}, {transform_indices = @transform_1, window_bounds = array<i64: 2, 512>}, {transform_indices = @transform_2, window_bounds = array<i64: 2, 512>}, {transform_indices = @transform_3, window_bounds = array<i64: 2, 512>}, {transform_indices = @transform_4, window_bounds = array<i64: 2, 512>}]} {
    %c0 = arith.constant 0 : index
    %c0_0 = arith.constant 0 : index
    %0 = vector.load %arg2[%c0, %c0_0] : memref<2x512xf32, #tpu.memory_space<vmem>>, vector<2x512xf32>
    %c0_1 = arith.constant 0 : index
    %1 = memref.load %arg1[%c0_1] : memref<3xf32, #tpu.memory_space<smem>>
    %2 = vector.broadcast %1 : f32 to vector<2x512xf32>
    %3 = arith.mulf %0, %2 : vector<2x512xf32>
    %c0_2 = arith.constant 0 : index
    %c0_3 = arith.constant 0 : index
    %4 = vector.load %arg3[%c0_2, %c0_3] : memref<2x512xf32, #tpu.memory_space<vmem>>, vector<2x512xf32>
    %c1 = arith.constant 1 : index
    %5 = memref.load %arg1[%c1] : memref<3xf32, #tpu.memory_space<smem>>
    %6 = vector.broadcast %5 : f32 to vector<2x512xf32>
    %7 = arith.mulf %4, %6 : vector<2x512xf32>
    %8 = arith.addf %3, %7 : vector<2x512xf32>
    %c0_4 = arith.constant 0 : index
    %c0_5 = arith.constant 0 : index
    %9 = vector.load %arg4[%c0_4, %c0_5] : memref<2x512xf32, #tpu.memory_space<vmem>>, vector<2x512xf32>
    %c2 = arith.constant 2 : index
    %10 = memref.load %arg1[%c2] : memref<3xf32, #tpu.memory_space<smem>>
    %11 = vector.broadcast %10 : f32 to vector<2x512xf32>
    %12 = arith.mulf %9, %11 : vector<2x512xf32>
    %13 = arith.addf %8, %12 : vector<2x512xf32>
    %c0_6 = arith.constant 0 : index
    %c0_7 = arith.constant 0 : index
    %14 = vector.load %arg5[%c0_6, %c0_7] : memref<2x512xf32, #tpu.memory_space<vmem>>, vector<2x512xf32>
    tpu.vector_store %arg5[%c0_6, %c0_7], %13 {strides = array<i32>} : memref<2x512xf32, #tpu.memory_space<vmem>>, vector<2x512xf32>,
    return
  }
  func.func @transform_0(%arg0: i32) -> i32 {
    %c0_i32 = arith.constant 0 : i32
    %c0_i32_0 = arith.constant 0 : i32
    return %c0_i32 : i32
  }
  func.func @transform_1(%arg0: i32) -> (i32, i32) {
    %c0_i32 = arith.constant 0 : i32
    %c0_i32_0 = arith.constant 0 : i32
    return %arg0, %c0_i32 : i32, i32
  }
  func.func @transform_2(%arg0: i32) -> (i32, i32) {
    %c0_i32 = arith.constant 0 : i32
    %c0_i32_0 = arith.constant 0 : i32
    return %arg0, %c0_i32 : i32, i32
  }
  func.func @transform_3(%arg0: i32) -> (i32, i32) {
    %c0_i32 = arith.constant 0 : i32
    %c0_i32_0 = arith.constant 0 : i32
    return %arg0, %c0_i32 : i32, i32
  }
  func.func @transform_4(%arg0: i32) -> (i32, i32) {
    %c0_i32 = arith.constant 0 : i32
    %c0_i32_0 = arith.constant 0 : i32
    return %arg0, %c0_i32 : i32, i32
  }
}

</mosaic_0001>

<llo_original>
// kernel: tpu_custom_call.1
$region0: #{tpu_custom_call.1}
  #allocation0 [shape = 'u32[]', space=smem, size = 0x4, offset = 0x4, fixed_abs, tag = 'smem constant byte address 0x4 - core index']
  #allocation1 [shape = 'u32[144,128]{1,0:T(1,128)}', space=vmem, size = 0x12000, scoped, tag = 'internal scratch']
  %s0 = inlined_call_operand.hbm [shape: f32[3], index: 0, kind: input, shape index: {}]
  %s1 = inlined_call_operand.hbm [shape: f32[2,512], index: 1, kind: input, shape index: {}]
  %s2 = inlined_call_operand.hbm [shape: f32[2,512], index: 2, kind: input, shape index: {}]
  %s3 = inlined_call_operand.vmem [shape: f32[2,512], index: 3, kind: input, shape index: {}]
  %s4 = inlined_call_operand.hbm [shape: f32[2,512], index: 4, kind: output, shape index: {}]
  %s5 = sld [smem:[#allocation0]]
  $region38: #{tpu_custom_call.1} parent=0
    _
  %s7 = ssub.s32 1, %s5
  %s8 = scalar_select 0, %s7, %s5
  $region1: #{tpu_custom_call.1} parent=0
    #allocation2 [shape = 'u8[512]{0}', space=smem, size = 0x200, scoped, tag = 'input window, operand 0, single buffered']
    #allocation3 [shape = 's32[1]{0}', space=sflag, size = 0x4, scoped, tag = 'scoped memory for tpu_custom_call.1']
    #allocation4 [shape = 's32[1]{0}', space=sflag, size = 0x4, scoped, tag = 'scoped memory for tpu_custom_call.1']
    #allocation5 [shape = 's32[1]{0}', space=sflag, size = 0x4, scoped, tag = 'scoped memory for tpu_custom_call.1']
    #allocation6 [shape = 'u8[4096]{0}', space=vmem, size = 0x1000, scoped, tag = 'input window, operand 1, single buffered']
    #allocation7 [shape = 'u8[4096]{0}', space=vmem, size = 0x1000, scoped, tag = 'input window, operand 2, single buffered']
    #allocation8 [shape = 's32[1]{0}', space=sflag, size = 0x4, scoped, tag = 'scoped memory for tpu_custom_call.1']
    #allocation9 [shape = 'u8[4096]{0}', space=vmem, size = 0x1000, scoped, tag = 'output window, operand 0, single buffered']
    %9 = vsyncpa [#allocation5], 0
    %10 = vsyncpa [#allocation3], 0
    %11 = vsyncpa [#allocation8], 0
    %12 = vsyncpa [#allocation4], 0
    // Predicated region
    $region2: #{tpu_custom_call.1} parent=1 // pred_check
      _
    $region3: #{tpu_custom_call.1} parent=1 // pred_check_branch
      %14 = sbr.rel (0) target = $region5
    $region4: #{tpu_custom_call.1} parent=1 // pred_region
      %s16 = ssub.s32 16, 16
      %17 = vsyncadd [#allocation5], %s16
      %20 = dma.hbm_to_smem %s0, 16, [#allocation2], [#allocation5]
    $region5: #{tpu_custom_call.1} parent=1 // pred_fallthru
      _
    // Predicated region
    $region6: #{tpu_custom_call.1} parent=1 // pred_check
      _
    $region7: #{tpu_custom_call.1} parent=1 // pred_check_branch
      %22 = sbr.rel (0) target = $region9
    $region8: #{tpu_custom_call.1} parent=1 // pred_region
      %s24 = ssub.s32 128, 128
      %25 = vsyncadd [#allocation3], %s24
      %s27 = sshll.u32 [#allocation6], 4
      %s28 = int_to_ptr.vmem [resolvable:$true] %s27
      %30 = dma.hbm_to_vmem [thread:$0]  %s1, 128, %s28, [#allocation3]
    $region9: #{tpu_custom_call.1} parent=1 // pred_fallthru
      _
    // Predicated region
    $region10: #{tpu_custom_call.1} parent=1 // pred_check
      _
    $region11: #{tpu_custom_call.1} parent=1 // pred_check_branch
      %32 = sbr.rel (0) target = $region13
    $region12: #{tpu_custom_call.1} parent=1 // pred_region
      %s34 = ssub.s32 128, 128
      %35 = vsyncadd [#allocation8], %s34
      %s37 = sshll.u32 [#allocation7], 4
      %s38 = int_to_ptr.vmem [resolvable:$true] %s37
      %40 = dma.hbm_to_vmem [thread:$0]  %s2, 128, %s38, [#allocation8]
    $region13: #{tpu_custom_call.1} parent=1 // pred_fallthru
      _
    // Predicated region
    $region14: #{tpu_custom_call.1} parent=1 // pred_check
      _
    $region15: #{tpu_custom_call.1} parent=1 // pred_check_branch
      %42 = sbr.rel (0) target = $region17
    $region16: #{tpu_custom_call.1} parent=1 // pred_region
      _
    $region17: #{tpu_custom_call.1} parent=1 // pred_fallthru
      _
    // Predicated region
    $region18: #{tpu_custom_call.1} parent=1 // pred_check
      _
    $region19: #{tpu_custom_call.1} parent=1 // pred_check_branch
      %44 = sbr.rel (0) target = $region21
    $region20: #{tpu_custom_call.1} parent=1 // pred_region
      %45 = dma.done [#allocation5], 16
    $region21: #{tpu_custom_call.1} parent=1 // pred_fallthru
      _
    // Predicated region
    $region22: #{tpu_custom_call.1} parent=1 // pred_check
      _
    $region23: #{tpu_custom_call.1} parent=1 // pred_check_branch
      %47 = sbr.rel (0) target = $region25
    $region24: #{tpu_custom_call.1} parent=1 // pred_region
      %48 = dma.done [#allocation3], 128
    $region25: #{tpu_custom_call.1} parent=1 // pred_fallthru
      _
    // Predicated region
    $region26: #{tpu_custom_call.1} parent=1 // pred_check
      _
    $region27: #{tpu_custom_call.1} parent=1 // pred_check_branch
      %50 = sbr.rel (0) target = $region29
    $region28: #{tpu_custom_call.1} parent=1 // pred_region
      %51 = dma.done [#allocation8], 128
    $region29: #{tpu_custom_call.1} parent=1 // pred_fallthru
      _
    %52 = sfence
    %v53 = vld [vmem:[#allocation6] sm:$0xff]
    %s54 = sld [smem:[#allocation2]]
    %v55 = vstv %s54
    %v56 = vmul.f32 %v53, %v55
    %v57 = vld [vmem:[#allocation7] sm:$0xff]
    %s58 = sld [smem:[#allocation2 + $0x1]]
    %v59 = vstv %s58
    %v60 = vmul.f32 %v57, %v59
    %v61 = vadd.f32 %v56, %v60
    %v62 = vld [vmem:[%s3] sm:$0xff]
    %s63 = sld [smem:[#allocation2 + $0x2]]
    %v64 = vstv %s63
    %v65 = vmul.f32 %v62, %v64
    %v66 = vadd.f32 %v61, %v65
    %67 = vst [vmem:[#allocation9] sm:$0xff] %v66
    // Predicated region
    $region30: #{tpu_custom_call.1} parent=1 // pred_check
      _
    $region31: #{tpu_custom_call.1} parent=1 // pred_check_branch
      %69 = sbr.rel (0) target = $region33
    $region32: #{tpu_custom_call.1} parent=1 // pred_region
      %s71 = ssub.s32 128, 128
      %72 = vsyncadd [#allocation4], %s71
      %s74 = sshll.u32 [#allocation9], 4
      %s75 = int_to_ptr.vmem [resolvable:$true] %s74
      %77 = dma.vmem_to_hbm [thread:$0]  %s75, 128, %s4, [#allocation4]
    $region33: #{tpu_custom_call.1} parent=1 // pred_fallthru
      _
    // Predicated region
    $region34: #{tpu_custom_call.1} parent=1 // pred_check
      _
    $region35: #{tpu_custom_call.1} parent=1 // pred_check_branch
      %79 = sbr.rel (0) target = $region37
    $region36: #{tpu_custom_call.1} parent=1 // pred_region
      %80 = dma.done [#allocation4], 128
    $region37: #{tpu_custom_call.1} parent=1 // pred_fallthru
      _
    %81 = vsyncpa [#allocation3], 1
    %82 = vsyncpa [#allocation8], 1
    %83 = vsyncpa [#allocation4], 1
    %84 = vsyncpa [#allocation5], 1

</llo_original>
